<compile_context>
chip_gen: v7x
topology: tpu7x:2x2x1
jax: 0.10.0
libtpu: 0.0.40
codegen_flags: <defaults>
</compile_context>

<pallas_src>
import functools
from enum import Enum

import jax
import jax.numpy as jnp
from jax import lax
from jax.experimental import pallas as pl
from jax.experimental.pallas import tpu as pltpu


class LinearQuantMode(Enum):
    SYMMETRIC = 1
    ASYMMETRIC_UNSIGNED = 2
    ASYMMETRIC_SIGNED = 3


_LANE_CANDIDATES = (2048, 1024, 512, 256, 128)
_TARGET_BLOCK_BYTES = 2 * 1024 * 1024      # ~2 MiB per block


# ------------------------- Pallas kernels -------------------------

def _minmax_kernel(x_ref, min_ref, max_ref, *, total_rows, block_rows, lanes, ragged):
    tile = x_ref[...].astype(jnp.float32)

    if ragged:
        # Last block sticks past the array: Pallas-padded contents are undefined,
        # mask invalid rows to +/-inf so they cannot corrupt the global min/max.
        # (Rare path: the wrapper prefers block_rows that divides rows exactly.)
        row0 = pl.program_id(0) * block_rows
        row_idx = lax.broadcasted_iota(jnp.int32, (block_rows, 1), 0) + row0
        valid = row_idx < total_rows                       # (block_rows, 1), broadcasts
        tile_for_min = jnp.where(valid, tile, jnp.inf)
        tile_for_max = jnp.where(valid, tile, -jnp.inf)
    else:
        tile_for_min = tile
        tile_for_max = tile

    if block_rows % 8 == 0 and block_rows > 8:
        # Elementwise (VALU) fold across sublane groups, then a single small
        # cross-lane (XLU) reduce of an (8, lanes) slab below.
        fmin = jnp.min(tile_for_min.reshape(block_rows // 8, 8, lanes), axis=0)
        fmax = jnp.max(tile_for_max.reshape(block_rows // 8, 8, lanes), axis=0)
    else:
        fmin, fmax = tile_for_min, tile_for_max

    min_ref[...] = jnp.min(fmin).reshape(1, 1, 1)
    max_ref[...] = jnp.max(fmax).reshape(1, 1, 1)


def _fakequant_kernel(params_ref, x_ref, o_ref, *, symmetric):
    # params (SMEM, f32[5]): [actual_min, actual_max, scale, zero_point, inv_scale]
    actual_min = params_ref[0]
    actual_max = params_ref[1]
    scale = params_ref[2]
    zero_point = params_ref[3]
    inv_scale = params_ref[4]

    x = x_ref[...].astype(jnp.float32)
    x = jnp.clip(x, actual_min, actual_max)        # clamp(input, actual_min, actual_max)
    if symmetric:                                  # zero_point is statically 0
        out = jnp.round(scale * x) * inv_scale
    else:
        out = (jnp.round(scale * x - zero_point) + zero_point) * inv_scale
    o_ref[...] = out.astype(o_ref.dtype)


# ------------------------- layout helpers -------------------------

def _lane_dense_view(x):
    """Lane-dense 2D view of x; copy-free whenever numel is a multiple of 128."""
    flat = x.reshape(-1)
    n = flat.shape[0]
    for lanes in _LANE_CANDIDATES:
        if n % lanes == 0:
            return flat.reshape(-1, lanes), n, False
    # TODO(synk): numel not a multiple of 128 -> padded-copy fallback (rare, small tensors).
    lanes = 128
    pad = (-n) % lanes
    flat = jnp.concatenate([flat, jnp.broadcast_to(flat[:1], (pad,))])  # neutral for min/max
    return flat.reshape(-1, lanes), n, True


def _pick_block_rows(rows, lanes, itemsize, override=None):
    """Pick a block row-count near the ~2 MiB target.

    Prefers a multiple-of-8 divisor of `rows` so every block is full (no ragged tail,
    no in-kernel masking). `override` (multiple of 8) is a test knob to force tiling.
    """
    if override is not None:
        return min(override, rows)
    target = max(8, (_TARGET_BLOCK_BYTES // (lanes * itemsize)) // 8 * 8)
    if rows <= target:
        return rows          # single full-extent block (any row count allowed)
    lower = max(8, target // 4)
    for br in range(target, lower - 1, -8):
        if rows % br == 0:
            return br        # exact divisor -> no ragged tail
    return target            # ragged tail, handled in-kernel


# ------------------------- pallas_call wrappers -------------------------

def pallas_tensor_min_max(x2d, block_rows=None):
    rows, lanes = x2d.shape
    br = _pick_block_rows(rows, lanes, x2d.dtype.itemsize, block_rows)
    nblk = pl.cdiv(rows, br)
    ragged = (rows % br) != 0
    kernel = functools.partial(_minmax_kernel, total_rows=rows, block_rows=br,
                               lanes=lanes, ragged=ragged)
    mins, maxs = pl.pallas_call(
        kernel,
        out_shape=(jax.ShapeDtypeStruct((nblk, 1, 1), jnp.float32),
                   jax.ShapeDtypeStruct((nblk, 1, 1), jnp.float32)),
        grid_spec=pltpu.PrefetchScalarGridSpec(
            num_scalar_prefetch=0,
            grid=(nblk,),
            in_specs=[pl.BlockSpec((br, lanes), lambda i: (i, 0))],
            out_specs=(pl.BlockSpec((1, 1, 1), lambda i: (i, 0, 0)),
                       pl.BlockSpec((1, 1, 1), lambda i: (i, 0, 0)))),
        compiler_params=pltpu.CompilerParams(
            dimension_semantics=("parallel",)),   # distinct output blocks -> megacore-friendly
    )(x2d)
    # Tiny partial-combine in plain JAX (nblk scalars).
    return jnp.min(mins), jnp.max(maxs)


def pallas_fake_quant(x2d, params, symmetric, block_rows=None):
    rows, lanes = x2d.shape
    br = _pick_block_rows(rows, lanes, x2d.dtype.itemsize, block_rows)
    nblk = pl.cdiv(rows, br)
    kernel = functools.partial(_fakequant_kernel, symmetric=symmetric)
    return pl.pallas_call(
        kernel,
        out_shape=jax.ShapeDtypeStruct(x2d.shape, x2d.dtype),   # write output in native dtype
        grid_spec=pltpu.PrefetchScalarGridSpec(
            num_scalar_prefetch=0,
            grid=(nblk,),
            in_specs=[pl.BlockSpec(memory_space=pltpu.MemorySpace.SMEM),
                      pl.BlockSpec((br, lanes), lambda i: (i, 0))],
            out_specs=pl.BlockSpec((br, lanes), lambda i: (i, 0))),
        compiler_params=pltpu.CompilerParams(
            dimension_semantics=("parallel",)),
    )(params, x2d)


# ------------------------- module state & glue (plain JAX) -------------------------

def init_state(ema_decay=0.999):
    f32 = lambda v: jnp.asarray(v, jnp.float32)
    # mirrors the registered buffers in FakeLinearQuantization.__init__
    return dict(
        ema_decay=f32(ema_decay),
        tracked_min_biased=f32(0.0),
        tracked_min=f32(0.0),
        tracked_max_biased=f32(0.0),
        tracked_max=f32(0.0),
        iter_count=f32(0.0),
        scale=f32(1.0),
        zero_point=f32(0.0),
    )


def _update_ema(biased_ema, value, decay, step):
    biased_ema = biased_ema * decay + (1.0 - decay) * value
    unbiased_ema = biased_ema / (1.0 - decay ** step)
    return biased_ema, unbiased_ema


def _symmetric_params(num_bits, sat_val):
    n = 2 ** (num_bits - 1) - 1
    sat_val = jnp.where(sat_val == 0, jnp.float32(n), sat_val)
    scale = n / sat_val
    return scale, jnp.float32(0.0)


def _asymmetric_params(num_bits, sat_min, sat_max, signed=False):
    n = 2 ** num_bits - 1
    sat_min = jnp.minimum(sat_min, 0.0)
    sat_max = jnp.maximum(sat_max, 0.0)
    diff = sat_max - sat_min
    diff = jnp.where(diff == 0, jnp.float32(n), diff)
    scale = n / diff
    zero_point = jnp.round(scale * sat_min)
    if signed:
        zero_point = zero_point + 2 ** (num_bits - 1)
    return scale, zero_point


def fake_linear_quantization_forward(x, state, num_bits=8,
                                     mode=LinearQuantMode.SYMMETRIC,
                                     dequantize=True, training=True,
                                     block_rows=None):
    assert dequantize, "only dequantize=True path implemented"
    # TODO(synk): inplace=True (PyTorch in-place clamp) has no Pallas equivalent; output is new.
    state = dict(state)
    x2d, n, padded = _lane_dense_view(x)

    if training:
        current_min, current_max = pallas_tensor_min_max(x2d, block_rows)
        state["iter_count"] = state["iter_count"] + 1.0
        state["tracked_min_biased"], state["tracked_min"] = _update_ema(
            state["tracked_min_biased"], current_min,
            state["ema_decay"], state["iter_count"])
        state["tracked_max_biased"], state["tracked_max"] = _update_ema(
            state["tracked_max_biased"], current_max,
            state["ema_decay"], state["iter_count"])

    symmetric = mode == LinearQuantMode.SYMMETRIC
    if symmetric:
        max_abs = jnp.maximum(jnp.abs(state["tracked_min"]),
                              jnp.abs(state["tracked_max"]))
        actual_min, actual_max = -max_abs, max_abs
        if training:
            state["scale"], state["zero_point"] = _symmetric_params(num_bits, max_abs)
    else:
        actual_min, actual_max = state["tracked_min"], state["tracked_max"]
        signed = mode == LinearQuantMode.ASYMMETRIC_SIGNED
        if training:
            state["scale"], state["zero_point"] = _asymmetric_params(
                num_bits, state["tracked_min"], state["tracked_max"], signed=signed)

    inv_scale = 1.0 / state["scale"]
    params = jnp.stack([actual_min, actual_max, state["scale"],
                        state["zero_point"], inv_scale]).astype(jnp.float32)
    out2d = pallas_fake_quant(x2d, params, symmetric, block_rows)
    if padded:
        out = out2d.reshape(-1)[:n].reshape(x.shape)
    else:
        out = out2d.reshape(x.shape)     # copy-free: same layout, metadata only
    return out, state


# ------------------------- demo -------------------------

if __name__ == "__main__":
    def reference_sym(x):
        # plain-jnp reference (first training step, SYMMETRIC, num_bits=8)
        cur_min, cur_max = jnp.min(x), jnp.max(x)
        _, tmin = _update_ema(jnp.float32(0.0), cur_min, jnp.float32(0.999), jnp.float32(1.0))
        _, tmax = _update_ema(jnp.float32(0.0), cur_max, jnp.float32(0.999), jnp.float32(1.0))
        max_abs = jnp.maximum(jnp.abs(tmin), jnp.abs(tmax))
        scale = 127.0 / max_abs
        return jnp.round(scale * jnp.clip(x, -max_abs, max_abs)) / scale

    def reference_asym(x):
        # plain-jnp reference (first training step, ASYMMETRIC_UNSIGNED, num_bits=8)
        cur_min, cur_max = jnp.min(x), jnp.max(x)
        _, tmin = _update_ema(jnp.float32(0.0), cur_min, jnp.float32(0.999), jnp.float32(1.0))
        _, tmax = _update_ema(jnp.float32(0.0), cur_max, jnp.float32(0.999), jnp.float32(1.0))
        sat_min, sat_max = jnp.minimum(tmin, 0.0), jnp.maximum(tmax, 0.0)
        scale = 255.0 / (sat_max - sat_min)
        zp = jnp.round(scale * sat_min)
        xc = jnp.clip(x, tmin, tmax)
        return (jnp.round(scale * xc - zp) + zp) / scale

    # --- case 1: NCHW activation (numel % 128 == 0 -> copy-free lane-dense path) ---
    key = jax.random.PRNGKey(0)
    x = jax.random.normal(key, (2, 4, 16, 16), dtype=jnp.float32)  # NCHW, like PyTorch
    out, new_state = fake_linear_quantization_forward(
        x, init_state(ema_decay=0.999), num_bits=8,
        mode=LinearQuantMode.SYMMETRIC, training=True)
    out = jax.block_until_ready(out)
    assert out.shape == x.shape and out.dtype == x.dtype
    assert jnp.allclose(out, reference_sym(x), atol=1e-5, rtol=1e-5)

    # --- case 2: ragged numel (not a multiple of 128 -> padded fallback path) ---
    x2 = jax.random.normal(jax.random.PRNGKey(1), (2, 3, 5, 7), dtype=jnp.float32)
    out2, _ = fake_linear_quantization_forward(
        x2, init_state(), num_bits=8, mode=LinearQuantMode.SYMMETRIC, training=True)
    out2 = jax.block_until_ready(out2)
    assert out2.shape == x2.shape and out2.dtype == x2.dtype
    assert jnp.allclose(out2, reference_sym(x2), atol=1e-5, rtol=1e-5)

    # --- case 3: forced small block_rows -> multi-block grid with a ragged tail ---
    x3 = jax.random.normal(jax.random.PRNGKey(2), (19, 128), dtype=jnp.float32)
    out3, _ = fake_linear_quantization_forward(
        x3, init_state(), num_bits=8, mode=LinearQuantMode.SYMMETRIC,
        training=True, block_rows=8)
    out3 = jax.block_until_ready(out3)
    assert out3.shape == x3.shape and out3.dtype == x3.dtype
    assert jnp.allclose(out3, reference_sym(x3), atol=1e-5, rtol=1e-5)

    # --- case 4: asymmetric-unsigned mode (nonzero zero-point path) ---
    x4 = jax.random.normal(jax.random.PRNGKey(3), (2, 4, 16, 16), dtype=jnp.float32) + 0.7
    out4, _ = fake_linear_quantization_forward(
        x4, init_state(), num_bits=8, mode=LinearQuantMode.ASYMMETRIC_UNSIGNED, training=True)
    out4 = jax.block_until_ready(out4)
    assert out4.shape == x4.shape and out4.dtype == x4.dtype
    assert jnp.allclose(out4, reference_asym(x4), atol=1e-5, rtol=1e-5)

    print("KERNEL_OK")
</pallas_src>

<mosaic_0001>
module attributes {stable_mosaic.version = 11 : i64} {
  func.func @_minmax_kernel(%arg0: i32, %arg1: memref<1x2048xf32, #tpu.memory_space<vmem>>, %arg2: memref<1x1x1xf32, #tpu.memory_space<vmem>>, %arg3: memref<1x1x1xf32, #tpu.memory_space<vmem>>) attributes {dimension_semantics = [#tpu.dimension_semantics<parallel>], iteration_bounds = array<i64: 1>, scalar_prefetch = 0 : i64, scratch_operands = 0 : i64, tpu.core_type = #tpu.core_type<tc>, window_params = [{transform_indices = @transform_0, window_bounds = array<i64: 1, 2048>}, {transform_indices = @transform_1, window_bounds = array<i64: 1, 1, 1>}, {transform_indices = @transform_2, window_bounds = array<i64: 1, 1, 1>}]} {
    %c0 = arith.constant 0 : index
    %c0_0 = arith.constant 0 : index
    %0 = vector.load %arg1[%c0, %c0_0] : memref<1x2048xf32, #tpu.memory_space<vmem>>, vector<1x2048xf32>
    %1 = vector.shape_cast %0 : vector<1x2048xf32> to vector<1x1x2048xf32>
    %cst = arith.constant dense<0x7F800000> : vector<1xf32>
    %2 = vector.multi_reduction <minimumf>, %1, %cst [1, 2] : vector<1x1x2048xf32> to vector<1xf32>
    %3 = vector.shape_cast %2 : vector<1xf32> to vector<1x1x1xf32>
    %4 = vector.extract %3[0, 0, 0] : f32 from vector<1x1x1xf32>
    %5 = vector.broadcast %4 : f32 to vector<1x1x1xf32>
    %c0_1 = arith.constant 0 : index
    %c0_2 = arith.constant 0 : index
    %c0_3 = arith.constant 0 : index
    %6 = vector.load %arg2[%c0_1, %c0_2, %c0_3] : memref<1x1x1xf32, #tpu.memory_space<vmem>>, vector<1x1x1xf32>
    tpu.vector_store %arg2[%c0_1, %c0_2, %c0_3], %5 {strides = array<i32>} : memref<1x1x1xf32, #tpu.memory_space<vmem>>, vector<1x1x1xf32>,
    %7 = vector.shape_cast %0 : vector<1x2048xf32> to vector<1x1x2048xf32>
    %cst_4 = arith.constant dense<0xFF800000> : vector<1xf32>
    %8 = vector.multi_reduction <maximumf>, %7, %cst_4 [1, 2] : vector<1x1x2048xf32> to vector<1xf32>
    %9 = vector.shape_cast %8 : vector<1xf32> to vector<1x1x1xf32>
    %10 = vector.extract %9[0, 0, 0] : f32 from vector<1x1x1xf32>
    %11 = vector.broadcast %10 : f32 to vector<1x1x1xf32>
    %c0_5 = arith.constant 0 : index
    %c0_6 = arith.constant 0 : index
    %c0_7 = arith.constant 0 : index
    %12 = vector.load %arg3[%c0_5, %c0_6, %c0_7] : memref<1x1x1xf32, #tpu.memory_space<vmem>>, vector<1x1x1xf32>
    tpu.vector_store %arg3[%c0_5, %c0_6, %c0_7], %11 {strides = array<i32>} : memref<1x1x1xf32, #tpu.memory_space<vmem>>, vector<1x1x1xf32>,
    return
  }
  func.func @transform_0(%arg0: i32) -> (i32, i32) {
    %c0_i32 = arith.constant 0 : i32
    %c0_i32_0 = arith.constant 0 : i32
    return %arg0, %c0_i32 : i32, i32
  }
  func.func @transform_1(%arg0: i32) -> (i32, i32, i32) {
    %c0_i32 = arith.constant 0 : i32
    %c0_i32_0 = arith.constant 0 : i32
    %c0_i32_1 = arith.constant 0 : i32
    return %arg0, %c0_i32, %c0_i32_0 : i32, i32, i32
  }
  func.func @transform_2(%arg0: i32) -> (i32, i32, i32) {
    %c0_i32 = arith.constant 0 : i32
    %c0_i32_0 = arith.constant 0 : i32
    %c0_i32_1 = arith.constant 0 : i32
    return %arg0, %c0_i32, %c0_i32_0 : i32, i32, i32
  }
}

</mosaic_0001>

<llo_original>
// kernel: tpu_custom_call.1
$region0: #{tpu_custom_call.1}
  #allocation0 [shape = 'u32[]', space=smem, size = 0x4, offset = 0x4, fixed_abs, tag = 'smem constant byte address 0x4 - core index']
  #allocation1 [shape = 'u32[144,128]{1,0:T(1,128)}', space=vmem, size = 0x12000, scoped, tag = 'internal scratch']
  %s0 = inlined_call_operand.hbm [shape: f32[1,2048], index: 0, kind: input, shape index: {}]
  %s1 = inlined_call_operand.hbm [shape: f32[1,1,1], index: 1, kind: output, shape index: {0}]
  %s2 = inlined_call_operand.hbm [shape: f32[1,1,1], index: 2, kind: output, shape index: {1}]
  %3 = xla_tuple %s1, %s2
  %s4 = sld [smem:[#allocation0]]
  $region26: #{tpu_custom_call.1} parent=0
    _
  %s6 = ssub.s32 1, %s4
  %s7 = scalar_select 0, %s6, %s4
  $region1: #{tpu_custom_call.1} parent=0
    #allocation2 [shape = 'u8[8192]{0}', space=vmem, size = 0x2000, scoped, tag = 'input window, operand 0, single buffered']
    #allocation3 [shape = 's32[1]{0}', space=sflag, size = 0x4, scoped, tag = 'scoped memory for tpu_custom_call.1']
    #allocation4 [shape = 's32[1]{0}', space=sflag, size = 0x4, scoped, tag = 'scoped memory for tpu_custom_call.1']
    #allocation5 [shape = 'u8[512]{0}', space=vmem, size = 0x400, scoped, tag = 'output window, operand 0, single buffered']
    #allocation6 [shape = 'u8[512]{0}', space=vmem, size = 0x400, scoped, tag = 'output window, operand 1, single buffered']
    #allocation7 [shape = 's32[1]{0}', space=sflag, size = 0x4, scoped, tag = 'scoped memory for tpu_custom_call.1']
    %8 = vsyncpa [#allocation3], 0
    %9 = vsyncpa [#allocation4], 0
    %10 = vsyncpa [#allocation7], 0
    // Predicated region
    $region2: #{tpu_custom_call.1} parent=1 // pred_check
      _
    $region3: #{tpu_custom_call.1} parent=1 // pred_check_branch
      %12 = sbr.rel (0) target = $region5
    $region4: #{tpu_custom_call.1} parent=1 // pred_region
      %s14 = ssub.s32 256, 256
      %15 = vsyncadd [#allocation3], %s14
      %s17 = sshll.u32 [#allocation2], 4
      %s18 = int_to_ptr.vmem [resolvable:$true] %s17
      %20 = dma.hbm_to_vmem [thread:$0]  %s0, 256, %s18, [#allocation3]
    $region5: #{tpu_custom_call.1} parent=1 // pred_fallthru
      _
    // Predicated region
    $region6: #{tpu_custom_call.1} parent=1 // pred_check
      _
    $region7: #{tpu_custom_call.1} parent=1 // pred_check_branch
      %22 = sbr.rel (0) target = $region9
    $region8: #{tpu_custom_call.1} parent=1 // pred_region
      %23 = dma.done [#allocation3], 256
    $region9: #{tpu_custom_call.1} parent=1 // pred_fallthru
      _
    %v24 = vld [vmem:[#allocation2] sm:$0xff]
    %v25 = vld [vmem:[#allocation2 + $0x8] sm:$0xff]
    %v28 = vlaneseq
    %v29 = vshrl.u32 %v28, 7
    %v30 = vsub.s32 0, %v29
    %v31 = vrot.slane %v24, %v30
    %v32 = vlaneseq
    %v33 = vshrl.u32 %v32, 7
    %v34 = vsub.s32 1, %v33
    %v35 = vrot.slane %v24, %v34
    %v36 = vlaneseq
    %v37 = vshrl.u32 %v36, 7
    %v38 = vsub.s32 2, %v37
    %v39 = vrot.slane %v24, %v38
    %v40 = vlaneseq
    %v41 = vshrl.u32 %v40, 7
    %v42 = vsub.s32 3, %v41
    %v43 = vrot.slane %v24, %v42
    %v44 = vlaneseq
    %v45 = vshrl.u32 %v44, 7
    %v46 = vsub.s32 4, %v45
    %v47 = vrot.slane %v24, %v46
    %v48 = vlaneseq
    %v49 = vshrl.u32 %v48, 7
    %v50 = vsub.s32 5, %v49
    %v51 = vrot.slane %v24, %v50
    %v52 = vlaneseq
    %v53 = vshrl.u32 %v52, 7
    %v54 = vsub.s32 6, %v53
    %v55 = vrot.slane %v24, %v54
    %v56 = vlaneseq
    %v57 = vshrl.u32 %v56, 7
    %v58 = vsub.s32 7, %v57
    %v59 = vrot.slane %v24, %v58
    %v60 = vlaneseq
    %v61 = vshrl.u32 %v60, 7
    %v62 = vsub.s32 0, %v61
    %v63 = vrot.slane %v25, %v62
    %v64 = vlaneseq
    %v65 = vshrl.u32 %v64, 7
    %v66 = vsub.s32 1, %v65
    %v67 = vrot.slane %v25, %v66
    %v68 = vlaneseq
    %v69 = vshrl.u32 %v68, 7
    %v70 = vsub.s32 2, %v69
    %v71 = vrot.slane %v25, %v70
    %v72 = vlaneseq
    %v73 = vshrl.u32 %v72, 7
    %v74 = vsub.s32 3, %v73
    %v75 = vrot.slane %v25, %v74
    %v76 = vlaneseq
    %v77 = vshrl.u32 %v76, 7
    %v78 = vsub.s32 4, %v77
    %v79 = vrot.slane %v25, %v78
    %v80 = vlaneseq
    %v81 = vshrl.u32 %v80, 7
    %v82 = vsub.s32 5, %v81
    %v83 = vrot.slane %v25, %v82
    %v84 = vlaneseq
    %v85 = vshrl.u32 %v84, 7
    %v86 = vsub.s32 6, %v85
    %v87 = vrot.slane %v25, %v86
    %v88 = vlaneseq
    %v89 = vshrl.u32 %v88, 7
    %v90 = vsub.s32 7, %v89
    %v91 = vrot.slane %v25, %v90
    %vm108 = vcmask 1040384
    %v109 = vsel %vm108, %v31, inf
    %v110 = vsel %vm108, %v35, inf
    %v111 = vsel %vm108, %v39, inf
    %v112 = vsel %vm108, %v43, inf
    %v113 = vsel %vm108, %v47, inf
    %v114 = vmin.f32 %v109, %v113
    %v115 = vsel %vm108, %v51, inf
    %v116 = vmin.f32 %v110, %v115
    %v117 = vsel %vm108, %v55, inf
    %v118 = vmin.f32 %v111, %v117
    %v119 = vsel %vm108, %v59, inf
    %v120 = vmin.f32 %v112, %v119
    %v121 = vsel %vm108, %v63, inf
    %v122 = vmin.f32 %v114, %v121
    %v123 = vsel %vm108, %v67, inf
    %v124 = vmin.f32 %v116, %v123
    %v125 = vsel %vm108, %v71, inf
    %v126 = vmin.f32 %v118, %v125
    %v127 = vsel %vm108, %v75, inf
    %v128 = vmin.f32 %v120, %v127
    %v129 = vsel %vm108, %v79, inf
    %v130 = vmin.f32 %v122, %v129
    %v131 = vsel %vm108, %v83, inf
    %v132 = vmin.f32 %v124, %v131
    %v133 = vsel %vm108, %v87, inf
    %v134 = vmin.f32 %v126, %v133
    %v135 = vsel %vm108, %v91, inf
    %v136 = vmin.f32 %v128, %v135
    %v137 = vmin.f32 %v130, %v132
    %v138 = vmin.f32 %v134, %v136
    %v139 = vmin.f32 %v137, %v138
    %140 = vmin.xlane.f32.xlu0 %v139
    %v141 = vpop.xlane.xlu0 %140
    %v142 = vrot.slane %v141, 4
    %v143 = vmin.f32 %v141, %v142
    %v144 = vrot.slane %v143, 2
    %v145 = vmin.f32 %v143, %v144
    %v146 = vrot.slane %v145, 1
    %v147 = vmin.f32 %v145, %v146
    %s148 = vtos %v147
    %v149 = vstv %s148
    %vm150 = vcmask 0
    %151 = vst.msk [vmem:[#allocation5] sm:$0x1] %vm150, %v149
    %v152 = vsel %vm108, %v31, -inf
    %v153 = vsel %vm108, %v35, -inf
    %v154 = vsel %vm108, %v39, -inf
    %v155 = vsel %vm108, %v43, -inf
    %v156 = vsel %vm108, %v47, -inf
    %v157 = vmax.f32 %v152, %v156
    %v158 = vsel %vm108, %v51, -inf
    %v159 = vmax.f32 %v153, %v158
    %v160 = vsel %vm108, %v55, -inf
    %v161 = vmax.f32 %v154, %v160
    %v162 = vsel %vm108, %v59, -inf
    %v163 = vmax.f32 %v155, %v162
    %v164 = vsel %vm108, %v63, -inf
    %v165 = vmax.f32 %v157, %v164
    %v166 = vsel %vm108, %v67, -inf
    %v167 = vmax.f32 %v159, %v166
    %v168 = vsel %vm108, %v71, -inf
    %v169 = vmax.f32 %v161, %v168
    %v170 = vsel %vm108, %v75, -inf
    %v171 = vmax.f32 %v163, %v170
    %v172 = vsel %vm108, %v79, -inf
    %v173 = vmax.f32 %v165, %v172
    %v174 = vsel %vm108, %v83, -inf
    %v175 = vmax.f32 %v167, %v174
    %v176 = vsel %vm108, %v87, -inf
    %v177 = vmax.f32 %v169, %v176
    %v178 = vsel %vm108, %v91, -inf
    %v179 = vmax.f32 %v171, %v178
    %v180 = vmax.f32 %v173, %v175
    %v181 = vmax.f32 %v177, %v179
    %v182 = vmax.f32 %v180, %v181
    %183 = vmax.xlane.f32.xlu0 %v182
    %v184 = vpop.xlane.xlu0 %183
    %v185 = vrot.slane %v184, 4
    %v186 = vmax.f32 %v184, %v185
    %v187 = vrot.slane %v186, 2
    %v188 = vmax.f32 %v186, %v187
    %v189 = vrot.slane %v188, 1
    %v190 = vmax.f32 %v188, %v189
    %s191 = vtos %v190
    %v192 = vstv %s191
    %193 = vst.msk [vmem:[#allocation6] sm:$0x1] %vm150, %v192
    // Predicated region
    $region10: #{tpu_custom_call.1} parent=1 // pred_check
      _
    $region11: #{tpu_custom_call.1} parent=1 // pred_check_branch
      %195 = sbr.rel (0) target = $region13
    $region12: #{tpu_custom_call.1} parent=1 // pred_region
      %s197 = ssub.s32 16, 16
      %198 = vsyncadd [#allocation4], %s197
      %s200 = sshll.u32 [#allocation5], 4
      %s201 = int_to_ptr.vmem [resolvable:$true] %s200
      %203 = dma.vmem_to_hbm [thread:$0]  %s201, 16, %s1, [#allocation4]
    $region13: #{tpu_custom_call.1} parent=1 // pred_fallthru
      _
    // Predicated region
    $region14: #{tpu_custom_call.1} parent=1 // pred_check
      _
    $region15: #{tpu_custom_call.1} parent=1 // pred_check_branch
      %205 = sbr.rel (0) target = $region17
    $region16: #{tpu_custom_call.1} parent=1 // pred_region
      %s207 = ssub.s32 16, 16
      %208 = vsyncadd [#allocation7], %s207
      %s210 = sshll.u32 [#allocation6], 4
      %s211 = int_to_ptr.vmem [resolvable:$true] %s210
      %213 = dma.vmem_to_hbm [thread:$0]  %s211, 16, %s2, [#allocation7]
    $region17: #{tpu_custom_call.1} parent=1 // pred_fallthru
      _
    // Predicated region
    $region18: #{tpu_custom_call.1} parent=1 // pred_check
      _
    $region19: #{tpu_custom_call.1} parent=1 // pred_check_branch
      %215 = sbr.rel (0) target = $region21
    $region20: #{tpu_custom_call.1} parent=1 // pred_region
      %216 = dma.done [#allocation4], 16
    $region21: #{tpu_custom_call.1} parent=1 // pred_fallthru
      _
    // Predicated region
    $region22: #{tpu_custom_call.1} parent=1 // pred_check
      _
    $region23: #{tpu_custom_call.1} parent=1 // pred_check_branch
      %218 = sbr.rel (0) target = $region25
    $region24: #{tpu_custom_call.1} parent=1 // pred_region
      %219 = dma.done [#allocation7], 16
    $region25: #{tpu_custom_call.1} parent=1 // pred_fallthru
      _
    %220 = vsyncpa [#allocation3], 1
    %221 = vsyncpa [#allocation4], 1
    %222 = vsyncpa [#allocation7], 1

</llo_original>
